<compile_context>
chip_gen: v7x
topology: tpu7x:2x2x1
jax: 0.10.0
libtpu: 0.0.40
codegen_flags: <defaults>
</compile_context>

<pallas_src>
import jax
import jax.numpy as jnp
from jax.experimental import pallas as pl
from jax.experimental.pallas import tpu as pltpu


def _round_up(x, m):
    return ((x + m - 1) // m) * m


# ---------------------------------------------------------------------------
# Kernel
# ---------------------------------------------------------------------------
def _make_fused_kernel(num_layers):
    """Kernel over one batch tile: chains all layers fully in-register/VMEM."""

    def kernel(alpha_ref, x_ref, *rest):
        out_ref = rest[-1]
        wb = rest[:-1]                              # (w0, b0, w1, b1, ...)
        x = x_ref[...]
        for l in range(num_layers):
            w = wb[2 * l][...]
            b = wb[2 * l + 1][...]                  # (1, N) broadcasts over rows
            y = jnp.dot(x.astype(w.dtype), w,
                        preferred_element_type=jnp.float32) + b
            a = alpha_ref[l]                        # scalar read from SMEM
            x = jnp.where(y < 0.0, a * y, y)        # parametric leaky activation
        out_ref[...] = x.astype(out_ref.dtype)

    return kernel


# ---------------------------------------------------------------------------
# One-time parameter preparation (hoisted out of the per-call path)
# ---------------------------------------------------------------------------
def prepare_params(params, *, weights_dtype=jnp.float32):
    """Pack/pad parameters once; reuse the result for every forward call.

    params: list of (w, b, a) with
        w: (F_in, F_out) float  (transpose of torch nn.Linear.weight)
        b: (1, F_out) or (F_out,) float
        a: scalar leak for this layer
    Only internal layer widths are padded to 128 lanes; the first layer's
    input width and the last layer's output width keep their true sizes so
    the caller's input/output never need host-side pad/slice copies.
    weights_dtype=jnp.bfloat16 trades exact f32 parity for higher MXU
    throughput and half the weight footprint (bias/activation math stays f32).
    """
    num_layers = len(params)
    dims = [params[0][0].shape[0]] + [w.shape[1] for (w, _, _) in params]
    dims_pad = ([dims[0]]
                + [_round_up(d, 128) for d in dims[1:-1]]
                + [dims[-1]])

    wb = []
    for l, (w, b, _) in enumerate(params):
        w = jnp.asarray(w, weights_dtype)
        b = jnp.reshape(jnp.asarray(b, jnp.float32), (1, -1))
        if w.shape == (dims_pad[l], dims_pad[l + 1]):
            w_p = w
        else:
            w_p = (jnp.zeros((dims_pad[l], dims_pad[l + 1]), weights_dtype)
                   .at[: dims[l], : dims[l + 1]].set(w))
        if b.shape == (1, dims_pad[l + 1]):
            b_p = b
        else:
            b_p = (jnp.zeros((1, dims_pad[l + 1]), jnp.float32)
                   .at[:, : dims[l + 1]].set(b))
        wb += [w_p, b_p]

    alphas = jnp.stack([jnp.reshape(jnp.asarray(a, jnp.float32), ())
                        for (_, _, a) in params])

    # TODO(synk): stream weights via an extra layer/K grid axis (or split the
    # network into two pallas_calls) once padded params approach ~40-50 MiB,
    # the practical v7x 64 MiB VMEM ceiling for the weights-resident strategy.
    return dict(wb=tuple(wb), alphas=alphas,
                dims=tuple(dims), dims_pad=tuple(dims_pad))


# ---------------------------------------------------------------------------
# Tiling / VMEM sizing helpers
# ---------------------------------------------------------------------------
def _pick_batch_tile(B, max_tile):
    max_tile = max(128, min(int(max_tile), 1024))
    if B <= max_tile:
        # Split moderate batches in two so the "parallel" grid axis actually
        # spans both v7x TensorCores; tiny batches use one full-size block
        # (block dim == full array dim needs no padding).
        if B >= 256 and B % 16 == 0:
            return B // 2
        return B
    # Large batch: pick the candidate tile with the least round-up waste
    # (ties -> larger tile to amortise the ~0.35 us per-grid-step overhead).
    candidates = [t for t in (1024, 768, 512, 384, 256, 128) if t <= max_tile]
    return min(candidates, key=lambda t: ((-B) % t, -t))


def _vmem_limit_bytes(dims, dims_pad, b_tile, weight_buffers, w_itemsize):
    """Estimate resident VMEM (lane/sublane-rounded) and return a safe limit."""
    def tile_bytes(r, c, itemsize):
        return _round_up(r, 8) * _round_up(c, 128) * itemsize

    wbytes = 0
    for l in range(len(dims) - 1):
        wbytes += tile_bytes(dims_pad[l], dims_pad[l + 1], w_itemsize)
        wbytes += tile_bytes(1, dims_pad[l + 1], 4)
    wbytes *= weight_buffers
    io = 2 * (tile_bytes(b_tile, dims[0], 4) + tile_bytes(b_tile, dims[-1], 4))
    act = 2 * tile_bytes(b_tile, max(dims_pad), 4)
    est = wbytes + io + act + (2 << 20)               # + scratch headroom
    return int(min(max(est, 32 << 20), 128 << 20))


# ---------------------------------------------------------------------------
# Forward pass
# ---------------------------------------------------------------------------
_SINGLE_BUFFER_WEIGHTS_OK = None   # lazily probed pl.Buffered(1) support


def nn_coupled_neurons_forward(prepared, xb, *, batch_tile=512):
    """Fused forward pass, semantics identical to NN_coupled_neurons.forward.

    prepared: output of prepare_params()
    xb:       (B, F_in) float32
    """
    global _SINGLE_BUFFER_WEIGHTS_OK

    wb = prepared["wb"]
    alphas = prepared["alphas"]
    dims = prepared["dims"]
    dims_pad = prepared["dims_pad"]
    num_layers = len(dims) - 1

    xb = jnp.asarray(xb, jnp.float32)
    B, F_in = xb.shape
    assert F_in == dims[0], "input feature dim mismatch"

    b_tile = _pick_batch_tile(B, batch_tile)
    b_pad = _round_up(B, b_tile)
    # Only a ragged batch pays a pad/slice; tile-aligned batches stream
    # straight from/to the caller's arrays.
    x_in = xb if b_pad == B else jnp.zeros((b_pad, F_in), jnp.float32).at[:B].set(xb)

    kernel = _make_fused_kernel(num_layers)
    n_out = dims[-1]
    grid = (b_pad // b_tile,)
    w_itemsize = jnp.dtype(wb[0].dtype).itemsize

    def call(single_buffer_weights):
        # Constant index_map -> weights/biases stay resident in VMEM across
        # grid steps; Buffered(1) (when supported) drops their double-buffer.
        wkw = {"pipeline_mode": pl.Buffered(1)} if single_buffer_weights else {}
        in_specs = [
            pl.BlockSpec(memory_space=pltpu.SMEM),                 # alphas
            pl.BlockSpec((b_tile, F_in), lambda i: (i, 0)),        # x tile
        ]
        for l in range(num_layers):
            in_specs.append(pl.BlockSpec(wb[2 * l].shape, lambda i: (0, 0), **wkw))
            in_specs.append(pl.BlockSpec(wb[2 * l + 1].shape, lambda i: (0, 0), **wkw))

        vmem_limit = _vmem_limit_bytes(
            dims, dims_pad, b_tile,
            weight_buffers=1 if single_buffer_weights else 2,
            w_itemsize=w_itemsize)

        return pl.pallas_call(
            kernel,
            out_shape=jax.ShapeDtypeStruct((b_pad, n_out), jnp.float32),
            grid=grid,
            in_specs=in_specs,
            out_specs=pl.BlockSpec((b_tile, n_out), lambda i: (i, 0)),
            compiler_params=pltpu.CompilerParams(
                dimension_semantics=("parallel",),   # megacore sharding (v7x)
                vmem_limit_bytes=vmem_limit,
            ),
        )(alphas, x_in, *wb)

    if _SINGLE_BUFFER_WEIGHTS_OK is None:
        try:
            out = call(True)
            _SINGLE_BUFFER_WEIGHTS_OK = True
        except Exception:
            _SINGLE_BUFFER_WEIGHTS_OK = False
            out = call(False)
    else:
        out = call(_SINGLE_BUFFER_WEIGHTS_OK)

    return out if b_pad == B else out[:B]


# ---------------------------------------------------------------------------
# Init + reference + self-test
# ---------------------------------------------------------------------------
def init_params(key, layer_sizes, alpha_0):
    """Deterministic init mirroring nn.Linear's U(-1/sqrt(fan_in), 1/sqrt(fan_in))."""
    params = []
    for l in range(len(layer_sizes) - 1):
        fan_in, fan_out = layer_sizes[l], layer_sizes[l + 1]
        key, kw, kb = jax.random.split(key, 3)
        bound = 1.0 / jnp.sqrt(jnp.float32(fan_in))
        w = jax.random.uniform(kw, (fan_in, fan_out), jnp.float32, -bound, bound)
        b = jax.random.uniform(kb, (1, fan_out), jnp.float32, -bound, bound)
        a = jnp.asarray(alpha_0[l], dtype=jnp.float32)
        params.append((w, b, a))
    return params


def _reference_forward(params, xb):
    x = xb
    for (w, b, a) in params:
        y = x @ w + b
        x = jnp.where(y < 0.0, a * y, y)
    return x


if __name__ == "__main__":
    # config['N'] analogue: small MLP sizes (one learnable leak per layer).
    layer_sizes = [32, 64, 48, 16]
    batch = 8
    alpha_0 = [0.1, 0.2, 0.3]

    key = jax.random.PRNGKey(0)
    key, kx = jax.random.split(key)
    xb = jax.random.normal(kx, (batch, layer_sizes[0]), dtype=jnp.float32)

    params = init_params(key, layer_sizes, alpha_0)
    prepared = prepare_params(params)          # one-time padding (hoisted)

    out = nn_coupled_neurons_forward(prepared, xb)
    out = jax.block_until_ready(out)

    # Sanity check against a plain-JAX reference.
    ref = _reference_forward(params, xb)
    assert out.shape == (batch, layer_sizes[-1])
    assert jnp.allclose(out, ref, atol=1e-5, rtol=1e-5), "mismatch vs reference"

    print("KERNEL_OK")
</pallas_src>

<mosaic_0001>
module attributes {stable_mosaic.version = 11 : i64} {
  func.func @kernel(%arg0: i32, %arg1: memref<3xf32, #tpu.memory_space<smem>>, %arg2: memref<8x32xf32, #tpu.memory_space<vmem>>, %arg3: memref<32x128xf32, #tpu.memory_space<vmem>>, %arg4: memref<1x128xf32, #tpu.memory_space<vmem>>, %arg5: memref<128x128xf32, #tpu.memory_space<vmem>>, %arg6: memref<1x128xf32, #tpu.memory_space<vmem>>, %arg7: memref<128x16xf32, #tpu.memory_space<vmem>>, %arg8: memref<1x16xf32, #tpu.memory_space<vmem>>, %arg9: memref<8x16xf32, #tpu.memory_space<vmem>>) attributes {dimension_semantics = [#tpu.dimension_semantics<parallel>], iteration_bounds = array<i64: 1>, scalar_prefetch = 0 : i64, scratch_operands = 0 : i64, tpu.core_type = #tpu.core_type<tc>, window_params = [{transform_indices = @transform_0, window_bounds = array<i64: 3>}, {transform_indices = @transform_1, window_bounds = array<i64: 8, 32>}, {pipeline_mode = #tpu.pipeline_mode<synchronous>, transform_indices = @transform_2, window_bounds = array<i64: 32, 128>}, {pipeline_mode = #tpu.pipeline_mode<synchronous>, transform_indices = @transform_3, window_bounds = array<i64: 1, 128>}, {pipeline_mode = #tpu.pipeline_mode<synchronous>, transform_indices = @transform_4, window_bounds = array<i64: 128, 128>}, {pipeline_mode = #tpu.pipeline_mode<synchronous>, transform_indices = @transform_5, window_bounds = array<i64: 1, 128>}, {pipeline_mode = #tpu.pipeline_mode<synchronous>, transform_indices = @transform_6, window_bounds = array<i64: 128, 16>}, {pipeline_mode = #tpu.pipeline_mode<synchronous>, transform_indices = @transform_7, window_bounds = array<i64: 1, 16>}, {transform_indices = @transform_8, window_bounds = array<i64: 8, 16>}]} {
    %c0 = arith.constant 0 : index
    %c0_0 = arith.constant 0 : index
    %0 = vector.load %arg2[%c0, %c0_0] : memref<8x32xf32, #tpu.memory_space<vmem>>, vector<8x32xf32>
    %c0_1 = arith.constant 0 : index
    %c0_2 = arith.constant 0 : index
    %1 = vector.load %arg3[%c0_1, %c0_2] : memref<32x128xf32, #tpu.memory_space<vmem>>, vector<32x128xf32>
    %c0_3 = arith.constant 0 : index
    %c0_4 = arith.constant 0 : index
    %2 = vector.load %arg4[%c0_3, %c0_4] : memref<1x128xf32, #tpu.memory_space<vmem>>, vector<1x128xf32>
    %cst = arith.constant dense<0.000000e+00> : vector<8x128xf32>
    %3 = tpu.matmul %0, %1, %cst {dimension_numbers = #tpu.dot_dimension_numbers<[1], [0], [0], [1], [0, 0, 1, 1], [], []>} : vector<8x32xf32>, vector<32x128xf32>, vector<8x128xf32> -> vector<8x128xf32>
    %4 = vector.broadcast %2 : vector<1x128xf32> to vector<8x128xf32>
    %5 = arith.addf %3, %4 : vector<8x128xf32>
    %c0_5 = arith.constant 0 : index
    %6 = memref.load %arg1[%c0_5] : memref<3xf32, #tpu.memory_space<smem>>
    %cst_6 = arith.constant 0.000000e+00 : f32
    %7 = vector.broadcast %cst_6 : f32 to vector<8x128xf32>
    %8 = arith.cmpf olt, %5, %7 : vector<8x128xf32>
    %9 = vector.broadcast %6 : f32 to vector<8x128xf32>
    %10 = arith.mulf %9, %5 : vector<8x128xf32>
    %11 = arith.select %8, %10, %5 : vector<8x128xi1>, vector<8x128xf32>
    %c0_7 = arith.constant 0 : index
    %c0_8 = arith.constant 0 : index
    %12 = vector.load %arg5[%c0_7, %c0_8] : memref<128x128xf32, #tpu.memory_space<vmem>>, vector<128x128xf32>
    %c0_9 = arith.constant 0 : index
    %c0_10 = arith.constant 0 : index
    %13 = vector.load %arg6[%c0_9, %c0_10] : memref<1x128xf32, #tpu.memory_space<vmem>>, vector<1x128xf32>
    %cst_11 = arith.constant dense<0.000000e+00> : vector<8x128xf32>
    %14 = tpu.matmul %11, %12, %cst_11 {dimension_numbers = #tpu.dot_dimension_numbers<[1], [0], [0], [1], [0, 0, 1, 1], [], []>} : vector<8x128xf32>, vector<128x128xf32>, vector<8x128xf32> -> vector<8x128xf32>
    %15 = vector.broadcast %13 : vector<1x128xf32> to vector<8x128xf32>
    %16 = arith.addf %14, %15 : vector<8x128xf32>
    %c1 = arith.constant 1 : index
    %17 = memref.load %arg1[%c1] : memref<3xf32, #tpu.memory_space<smem>>
    %cst_12 = arith.constant 0.000000e+00 : f32
    %18 = vector.broadcast %cst_12 : f32 to vector<8x128xf32>
    %19 = arith.cmpf olt, %16, %18 : vector<8x128xf32>
    %20 = vector.broadcast %17 : f32 to vector<8x128xf32>
    %21 = arith.mulf %20, %16 : vector<8x128xf32>
    %22 = arith.select %19, %21, %16 : vector<8x128xi1>, vector<8x128xf32>
    %c0_13 = arith.constant 0 : index
    %c0_14 = arith.constant 0 : index
    %23 = vector.load %arg7[%c0_13, %c0_14] : memref<128x16xf32, #tpu.memory_space<vmem>>, vector<128x16xf32>
    %c0_15 = arith.constant 0 : index
    %c0_16 = arith.constant 0 : index
    %24 = vector.load %arg8[%c0_15, %c0_16] : memref<1x16xf32, #tpu.memory_space<vmem>>, vector<1x16xf32>
    %cst_17 = arith.constant dense<0.000000e+00> : vector<8x16xf32>
    %25 = tpu.matmul %22, %23, %cst_17 {dimension_numbers = #tpu.dot_dimension_numbers<[1], [0], [0], [1], [0, 0, 1, 1], [], []>} : vector<8x128xf32>, vector<128x16xf32>, vector<8x16xf32> -> vector<8x16xf32>
    %26 = vector.broadcast %24 : vector<1x16xf32> to vector<8x16xf32>
    %27 = arith.addf %25, %26 : vector<8x16xf32>
    %c2 = arith.constant 2 : index
    %28 = memref.load %arg1[%c2] : memref<3xf32, #tpu.memory_space<smem>>
    %cst_18 = arith.constant 0.000000e+00 : f32
    %29 = vector.broadcast %cst_18 : f32 to vector<8x16xf32>
    %30 = arith.cmpf olt, %27, %29 : vector<8x16xf32>
    %31 = vector.broadcast %28 : f32 to vector<8x16xf32>
    %32 = arith.mulf %31, %27 : vector<8x16xf32>
    %33 = arith.select %30, %32, %27 : vector<8x16xi1>, vector<8x16xf32>
    %c0_19 = arith.constant 0 : index
    %c0_20 = arith.constant 0 : index
    %34 = vector.load %arg9[%c0_19, %c0_20] : memref<8x16xf32, #tpu.memory_space<vmem>>, vector<8x16xf32>
    tpu.vector_store %arg9[%c0_19, %c0_20], %33 {strides = array<i32>} : memref<8x16xf32, #tpu.memory_space<vmem>>, vector<8x16xf32>,
    return
  }
  func.func @transform_0(%arg0: i32) -> i32 {
    %c0_i32 = arith.constant 0 : i32
    %c0_i32_0 = arith.constant 0 : i32
    return %c0_i32 : i32
  }
  func.func @transform_1(%arg0: i32) -> (i32, i32) {
    %c0_i32 = arith.constant 0 : i32
    %c0_i32_0 = arith.constant 0 : i32
    return %arg0, %c0_i32 : i32, i32
  }
  func.func @transform_2(%arg0: i32) -> (i32, i32) {
    %c0_i32 = arith.constant 0 : i32
    %c0_i32_0 = arith.constant 0 : i32
    %c0_i32_1 = arith.constant 0 : i32
    return %c0_i32, %c0_i32_0 : i32, i32
  }
  func.func @transform_3(%arg0: i32) -> (i32, i32) {
    %c0_i32 = arith.constant 0 : i32
    %c0_i32_0 = arith.constant 0 : i32
    %c0_i32_1 = arith.constant 0 : i32
    return %c0_i32, %c0_i32_0 : i32, i32
  }
  func.func @transform_4(%arg0: i32) -> (i32, i32) {
    %c0_i32 = arith.constant 0 : i32
    %c0_i32_0 = arith.constant 0 : i32
    %c0_i32_1 = arith.constant 0 : i32
    return %c0_i32, %c0_i32_0 : i32, i32
  }
  func.func @transform_5(%arg0: i32) -> (i32, i32) {
    %c0_i32 = arith.constant 0 : i32
    %c0_i32_0 = arith.constant 0 : i32
    %c0_i32_1 = arith.constant 0 : i32
    return %c0_i32, %c0_i32_0 : i32, i32
  }
  func.func @transform_6(%arg0: i32) -> (i32, i32) {
    %c0_i32 = arith.constant 0 : i32
    %c0_i32_0 = arith.constant 0 : i32
    %c0_i32_1 = arith.constant 0 : i32
    return %c0_i32, %c0_i32_0 : i32, i32
  }
  func.func @transform_7(%arg0: i32) -> (i32, i32) {
    %c0_i32 = arith.constant 0 : i32
    %c0_i32_0 = arith.constant 0 : i32
    %c0_i32_1 = arith.constant 0 : i32
    return %c0_i32, %c0_i32_0 : i32, i32
  }
  func.func @transform_8(%arg0: i32) -> (i32, i32) {
    %c0_i32 = arith.constant 0 : i32
    %c0_i32_0 = arith.constant 0 : i32
    return %arg0, %c0_i32 : i32, i32
  }
}

module attributes {stable_mosaic.version = 11 : i64} {
  func.func @kernel(%arg0: i32, %arg1: memref<3xf32, #tpu.memory_space<smem>>, %arg2: memref<8x32xf32, #tpu.memory_space<vmem>>, %arg3: memref<32x128xf32, #tpu.memory_space<vmem>>, %arg4: memref<1x128xf32, #tpu.memory_space<vmem>>, %arg5: memref<128x128xf32, #tpu.memory_space<vmem>>, %arg6: memref<1x128xf32, #tpu.memory_space<vmem>>, %arg7: memref<128x16xf32, #tpu.memory_space<vmem>>, %arg8: memref<1x16xf32, #tpu.memory_space<vmem>>, %arg9: memref<8x16xf32, #tpu.memory_space<vmem>>) attributes {dimension_semantics = [#tpu.dimension_semantics<parallel>], iteration_bounds = array<i64: 1>, scalar_prefetch = 0 : i64, scratch_operands = 0 : i64, tpu.core_type = #tpu.core_type<tc>, window_params = [{transform_indices = @transform_0, window_bounds = array<i64: 3>}, {transform_indices = @transform_1, window_bounds = array<i64: 8, 32>}, {pipeline_mode = #tpu.pipeline_mode<synchronous>, transform_indices = @transform_2, window_bounds = array<i64: 32, 128>}, {pipeline_mode = #tpu.pipeline_mode<synchronous>, transform_indices = @transform_3, window_bounds = array<i64: 1, 128>}, {pipeline_mode = #tpu.pipeline_mode<synchronous>, transform_indices = @transform_4, window_bounds = array<i64: 128, 128>}, {pipeline_mode = #tpu.pipeline_mode<synchronous>, transform_indices = @transform_5, window_bounds = array<i64: 1, 128>}, {pipeline_mode = #tpu.pipeline_mode<synchronous>, transform_indices = @transform_6, window_bounds = array<i64: 128, 16>}, {pipeline_mode = #tpu.pipeline_mode<synchronous>, transform_indices = @transform_7, window_bounds = array<i64: 1, 16>}, {transform_indices = @transform_8, window_bounds = array<i64: 8, 16>}]} {
    %c0 = arith.constant 0 : index
    %c0_0 = arith.constant 0 : index
    %0 = vector.load %arg2[%c0, %c0_0] : memref<8x32xf32, #tpu.memory_space<vmem>>, vector<8x32xf32>
    %c0_1 = arith.constant 0 : index
    %c0_2 = arith.constant 0 : index
    %1 = vector.load %arg3[%c0_1, %c0_2] : memref<32x128xf32, #tpu.memory_space<vmem>>, vector<32x128xf32>
    %c0_3 = arith.constant 0 : index
    %c0_4 = arith.constant 0 : index
    %2 = vector.load %arg4[%c0_3, %c0_4] : memref<1x128xf32, #tpu.memory_space<vmem>>, vector<1x128xf32>
    %cst = arith.constant dense<0.000000e+00> : vector<8x128xf32>
    %3 = tpu.matmul %0, %1, %cst {dimension_numbers = #tpu.dot_dimension_numbers<[1], [0], [0], [1], [0, 0, 1, 1], [], []>} : vector<8x32xf32>, vector<32x128xf32>, vector<8x128xf32> -> vector<8x128xf32>
    %4 = vector.broadcast %2 : vector<1x128xf32> to vector<8x128xf32>
    %5 = arith.addf %3, %4 : vector<8x128xf32>
    %c0_5 = arith.constant 0 : index
    %6 = memref.load %arg1[%c0_5] : memref<3xf32, #tpu.memory_space<smem>>
    %cst_6 = arith.constant 0.000000e+00 : f32
    %7 = vector.broadcast %cst_6 : f32 to vector<8x128xf32>
    %8 = arith.cmpf olt, %5, %7 : vector<8x128xf32>
    %9 = vector.broadcast %6 : f32 to vector<8x128xf32>
    %10 = arith.mulf %9, %5 : vector<8x128xf32>
    %11 = arith.select %8, %10, %5 : vector<8x128xi1>, vector<8x128xf32>
    %c0_7 = arith.constant 0 : index
    %c0_8 = arith.constant 0 : index
    %12 = vector.load %arg5[%c0_7, %c0_8] : memref<128x128xf32, #tpu.memory_space<vmem>>, vector<128x128xf32>
    %c0_9 = arith.constant 0 : index
    %c0_10 = arith.constant 0 : index
    %13 = vector.load %arg6[%c0_9, %c0_10] : memref<1x128xf32, #tpu.memory_space<vmem>>, vector<1x128xf32>
    %cst_11 = arith.constant dense<0.000000e+00> : vector<8x128xf32>
    %14 = tpu.matmul %11, %12, %cst_11 {dimension_numbers = #tpu.dot_dimension_numbers<[1], [0], [0], [1], [0, 0, 1, 1], [], []>} : vector<8x128xf32>, vector<128x128xf32>, vector<8x128xf32> -> vector<8x128xf32>
    %15 = vector.broadcast %13 : vector<1x128xf32> to vector<8x128xf32>
    %16 = arith.addf %14, %15 : vector<8x128xf32>
    %c1 = arith.constant 1 : index
    %17 = memref.load %arg1[%c1] : memref<3xf32, #tpu.memory_space<smem>>
    %cst_12 = arith.constant 0.000000e+00 : f32
    %18 = vector.broadcast %cst_12 : f32 to vector<8x128xf32>
    %19 = arith.cmpf olt, %16, %18 : vector<8x128xf32>
    %20 = vector.broadcast %17 : f32 to vector<8x128xf32>
    %21 = arith.mulf %20, %16 : vector<8x128xf32>
    %22 = arith.select %19, %21, %16 : vector<8x128xi1>, vector<8x128xf32>
    %c0_13 = arith.constant 0 : index
    %c0_14 = arith.constant 0 : index
    %23 = vector.load %arg7[%c0_13, %c0_14] : memref<128x16xf32, #tpu.memory_space<vmem>>, vector<128x16xf32>
    %c0_15 = arith.constant 0 : index
    %c0_16 = arith.constant 0 : index
    %24 = vector.load %arg8[%c0_15, %c0_16] : memref<1x16xf32, #tpu.memory_space<vmem>>, vector<1x16xf32>
    %cst_17 = arith.constant dense<0.000000e+00> : vector<8x16xf32>
    %25 = tpu.matmul %22, %23, %cst_17 {dimension_numbers = #tpu.dot_dimension_numbers<[1], [0], [0], [1], [0, 0, 1, 1], [], []>} : vector<8x128xf32>, vector<128x16xf32>, vector<8x16xf32> -> vector<8x16xf32>
    %26 = vector.broadcast %24 : vector<1x16xf32> to vector<8x16xf32>
    %27 = arith.addf %25, %26 : vector<8x16xf32>
    %c2 = arith.constant 2 : index
    %28 = memref.load %arg1[%c2] : memref<3xf32, #tpu.memory_space<smem>>
    %cst_18 = arith.constant 0.000000e+00 : f32
    %29 = vector.broadcast %cst_18 : f32 to vector<8x16xf32>
    %30 = arith.cmpf olt, %27, %29 : vector<8x16xf32>
    %31 = vector.broadcast %28 : f32 to vector<8x16xf32>
    %32 = arith.mulf %31, %27 : vector<8x16xf32>
    %33 = arith.select %30, %32, %27 : vector<8x16xi1>, vector<8x16xf32>
    %c0_19 = arith.constant 0 : index
    %c0_20 = arith.constant 0 : index
    %34 = vector.load %arg9[%c0_19, %c0_20] : memref<8x16xf32, #tpu.memory_space<vmem>>, vector<8x16xf32>
    tpu.vector_store %arg9[%c0_19, %c0_20], %33 {strides = array<i32>} : memref<8x16xf32, #tpu.memory_space<vmem>>, vector<8x16xf32>,
    return
  }
  func.func @transform_0(%arg0: i32) -> i32 {
    %c0_i32 = arith.constant 0 : i32
    %c0_i32_0 = arith.constant 0 : i32
    return %c0_i32 : i32
  }
  func.func @transform_1(%arg0: i32) -> (i32, i32) {
    %c0_i32 = arith.constant 0 : i32
    %c0_i32_0 = arith.constant 0 : i32
    return %arg0, %c0_i32 : i32, i32
  }
  func.func @transform_2(%arg0: i32) -> (i32, i32) {
    %c0_i32 = arith.constant 0 : i32
    %c0_i32_0 = arith.constant 0 : i32
    %c0_i32_1 = arith.constant 0 : i32
    return %c0_i32, %c0_i32_0 : i32, i32
  }
  func.func @transform_3(%arg0: i32) -> (i32, i32) {
    %c0_i32 = arith.constant 0 : i32
    %c0_i32_0 = arith.constant 0 : i32
    %c0_i32_1 = arith.constant 0 : i32
    return %c0_i32, %c0_i32_0 : i32, i32
  }
  func.func @transform_4(%arg0: i32) -> (i32, i32) {
    %c0_i32 = arith.constant 0 : i32
    %c0_i32_0 = arith.constant 0 : i32
    %c0_i32_1 = arith.constant 0 : i32
    return %c0_i32, %c0_i32_0 : i32, i32
  }
  func.func @transform_5(%arg0: i32) -> (i32, i32) {
    %c0_i32 = arith.constant 0 : i32
    %c0_i32_0 = arith.constant 0 : i32
    %c0_i32_1 = arith.constant 0 : i32
    return %c0_i32, %c0_i32_0 : i32, i32
  }
  func.func @transform_6(%arg0: i32) -> (i32, i32) {
    %c0_i32 = arith.constant 0 : i32
    %c0_i32_0 = arith.constant 0 : i32
    %c0_i32_1 = arith.constant 0 : i32
    return %c0_i32, %c0_i32_0 : i32, i32
  }
  func.func @transform_7(%arg0: i32) -> (i32, i32) {
    %c0_i32 = arith.constant 0 : i32
    %c0_i32_0 = arith.constant 0 : i32
    %c0_i32_1 = arith.constant 0 : i32
    return %c0_i32, %c0_i32_0 : i32, i32
  }
  func.func @transform_8(%arg0: i32) -> (i32, i32) {
    %c0_i32 = arith.constant 0 : i32
    %c0_i32_0 = arith.constant 0 : i32
    return %arg0, %c0_i32 : i32, i32
  }
}

</mosaic_0001>

<llo_original>
// kernel: tpu_custom_call.1
$region0: #{tpu_custom_call.1}
  #allocation0 [shape = 'u32[]', space=smem, size = 0x4, offset = 0x4, fixed_abs, tag = 'smem constant byte address 0x4 - core index']
  #allocation1 [shape = 'u32[144,128]{1,0:T(1,128)}', space=vmem, size = 0x12000, scoped, tag = 'internal scratch']
  %s0 = inlined_call_operand.vmem [shape: f32[3], index: 0, kind: input, shape index: {}]
  %s1 = inlined_call_operand.vmem [shape: f32[8,32], index: 1, kind: input, shape index: {}]
  %s2 = inlined_call_operand.hbm [shape: f32[32,128], index: 2, kind: input, shape index: {}]
  %s3 = inlined_call_operand.vmem [shape: f32[1,128], index: 3, kind: input, shape index: {}]
  %s4 = inlined_call_operand.vmem [shape: f32[128,128], index: 4, kind: input, shape index: {}]
  %s5 = inlined_call_operand.vmem [shape: f32[1,128], index: 5, kind: input, shape index: {}]
  %s6 = inlined_call_operand.vmem [shape: f32[128,16], index: 6, kind: input, shape index: {}]
  %s7 = inlined_call_operand.vmem [shape: f32[1,16], index: 7, kind: input, shape index: {}]
  %s8 = inlined_call_operand.hbm [shape: f32[8,16], index: 8, kind: output, shape index: {}]
  %s9 = sld [smem:[#allocation0]]
  $region50: #{tpu_custom_call.1} parent=0
    _
  %s11 = ssub.s32 1, %s9
  %s12 = scalar_select 0, %s11, %s9
  $region1: #{tpu_custom_call.1} parent=0
    #allocation2 [shape = 'u8[512]{0}', space=smem, size = 0x200, scoped, tag = 'input window, operand 0, single buffered']
    #allocation3 [shape = 's32[1]{0}', space=sflag, size = 0x4, scoped, tag = 'scoped memory for tpu_custom_call.1']
    #allocation4 [shape = 's32[1]{0}', space=sflag, size = 0x4, scoped, tag = 'scoped memory for tpu_custom_call.1']
    #allocation5 [shape = 's32[1]{0}', space=sflag, size = 0x4, scoped, tag = 'scoped memory for tpu_custom_call.1']
    #allocation6 [shape = 'u8[16384]{0}', space=vmem, size = 0x4000, scoped, tag = 'input window, operand 2, single buffered']
    #allocation7 [shape = 'u8[4096]{0}', space=vmem, size = 0x1000, scoped, tag = 'output window, operand 0, single buffered']
    %13 = vsyncpa [#allocation5], 0
    %14 = vsyncpa [#allocation3], 0
    %15 = vsyncpa [#allocation4], 0
    // Predicated region
    $region2: #{tpu_custom_call.1} parent=1 // pred_check
      _
    $region3: #{tpu_custom_call.1} parent=1 // pred_check_branch
      %17 = sbr.rel (0) target = $region5
    $region4: #{tpu_custom_call.1} parent=1 // pred_region
      %s19 = ssub.s32 16, 16
      %20 = vsyncadd [#allocation5], %s19
      %s22 = sshll.u32 %s0, 4
      %s23 = int_to_ptr.vmem [resolvable:$true] %s22
      %25 = dma.vmem_to_smem %s23, 16, [#allocation2], [#allocation5]
    $region5: #{tpu_custom_call.1} parent=1 // pred_fallthru
      _
    // Predicated region
    $region6: #{tpu_custom_call.1} parent=1 // pred_check
      _
    $region7: #{tpu_custom_call.1} parent=1 // pred_check_branch
      %27 = sbr.rel (0) target = $region9
    $region8: #{tpu_custom_call.1} parent=1 // pred_region
      _
    $region9: #{tpu_custom_call.1} parent=1 // pred_fallthru
      _
    // Predicated region
    $region10: #{tpu_custom_call.1} parent=1 // pred_check
      _
    $region11: #{tpu_custom_call.1} parent=1 // pred_check_branch
      %29 = sbr.rel (0) target = $region13
    $region12: #{tpu_custom_call.1} parent=1 // pred_region
      %s31 = ssub.s32 512, 512
      %32 = vsyncadd [#allocation3], %s31
      %s33 = sshll.u32 [#allocation6], 4
      %s34 = int_to_ptr.vmem [resolvable:$true] %s33
      %39 = dma.hbm_to_vmem [thread:$0]  %s2, 512, %s34, [#allocation3], 128, 128, 8
    $region13: #{tpu_custom_call.1} parent=1 // pred_fallthru
      _
    // Predicated region
    $region14: #{tpu_custom_call.1} parent=1 // pred_check
      _
    $region15: #{tpu_custom_call.1} parent=1 // pred_check_branch
      %41 = sbr.rel (0) target = $region17
    $region16: #{tpu_custom_call.1} parent=1 // pred_region
      _
    $region17: #{tpu_custom_call.1} parent=1 // pred_fallthru
      _
    // Predicated region
    $region18: #{tpu_custom_call.1} parent=1 // pred_check
      _
    $region19: #{tpu_custom_call.1} parent=1 // pred_check_branch
      %43 = sbr.rel (0) target = $region21
    $region20: #{tpu_custom_call.1} parent=1 // pred_region
      _
    $region21: #{tpu_custom_call.1} parent=1 // pred_fallthru
      _
    // Predicated region
    $region22: #{tpu_custom_call.1} parent=1 // pred_check
      _
    $region23: #{tpu_custom_call.1} parent=1 // pred_check_branch
      %45 = sbr.rel (0) target = $region25
    $region24: #{tpu_custom_call.1} parent=1 // pred_region
      _
    $region25: #{tpu_custom_call.1} parent=1 // pred_fallthru
      _
    // Predicated region
    $region26: #{tpu_custom_call.1} parent=1 // pred_check
      _
    $region27: #{tpu_custom_call.1} parent=1 // pred_check_branch
      %47 = sbr.rel (0) target = $region29
    $region28: #{tpu_custom_call.1} parent=1 // pred_region
      _
    $region29: #{tpu_custom_call.1} parent=1 // pred_fallthru
      _
    // Predicated region
    $region30: #{tpu_custom_call.1} parent=1 // pred_check
      _
    $region31: #{tpu_custom_call.1} parent=1 // pred_check_branch
      %49 = sbr.rel (0) target = $region33
    $region32: #{tpu_custom_call.1} parent=1 // pred_region
      _
    $region33: #{tpu_custom_call.1} parent=1 // pred_fallthru
      _
    // Predicated region
    $region34: #{tpu_custom_call.1} parent=1 // pred_check
      _
    $region35: #{tpu_custom_call.1} parent=1 // pred_check_branch
      %51 = sbr.rel (0) target = $region37
    $region36: #{tpu_custom_call.1} parent=1 // pred_region
      %52 = dma.done [#allocation5], 16
    $region37: #{tpu_custom_call.1} parent=1 // pred_fallthru
      _
    // Predicated region
    $region38: #{tpu_custom_call.1} parent=1 // pred_check
      _
    $region39: #{tpu_custom_call.1} parent=1 // pred_check_branch
      %54 = sbr.rel (0) target = $region41
    $region40: #{tpu_custom_call.1} parent=1 // pred_region
      %55 = dma.done [#allocation3], 512
    $region41: #{tpu_custom_call.1} parent=1 // pred_fallthru
      _
    %56 = sfence
    %v57 = vld [vmem:[%s1] sm:$0xff]
    %v58 = vld [vmem:[#allocation6] sm:$0xff]
    %v59 = vld [vmem:[#allocation6 + $0x8] sm:$0xff]
    %v60 = vld [vmem:[#allocation6 + $0x10] sm:$0xff]
    %v61 = vld [vmem:[#allocation6 + $0x18] sm:$0xff]
    %v62 = vld [vmem:[%s3] sm:$0x1]
    %v64 = vlaneseq
    %v65 = vshrl.u32 %v64, 7
    %v66 = vsub.s32 0, %v65
    %v67 = vrot.slane %v62, %v66
    %vm69 = vcmask 261120
    %v71 = vsel %vm69, %v57, 0
    %73 = vmatprep.subr.mxu0 0.0
    %74 = vmatpush1.msra.mxu0 %v58
    %75 = vmatprep.subr.mxu0 0.0
    %76 = vmatpush1.msra.mxu0 %v59
    %77 = vmatprep.subr.mxu0 0.0
    %78 = vmatpush1.msra.mxu0 %v60
    %79 = vmatprep.subr.mxu0 0.0
    %80 = vmatpush1.msra.mxu0 %v61
    %81 = vmatprep.subr.mxu0 0.0
    %82 = vmatpush1.msra.mxu0 0.0
    %83 = vmatprep.subr.mxu0 0.0
    %84 = vmatpush1.msra.mxu0 0.0
    %85 = vmatprep.subr.mxu0 0.0
    %86 = vmatpush1.msra.mxu0 0.0
    %87 = vmatprep.subr.mxu0 0.0
    %88 = vmatpush1.msra.mxu0 0.0
    %89 = vmatprep.subr.mxu0 0.0
    %90 = vmatpush1.msra.mxu0 0.0
    %91 = vmatprep.subr.mxu0 0.0
    %92 = vmatpush1.msra.mxu0 0.0
    %93 = vmatprep.subr.mxu0 0.0
    %94 = vmatpush1.msra.mxu0 0.0
    %95 = vmatprep.subr.mxu0 0.0
    %96 = vmatpush1.msra.mxu0 0.0
    %97 = vmatprep.subr.mxu0 0.0
    %98 = vmatpush1.msra.mxu0 0.0
    %99 = vmatprep.subr.mxu0 0.0
    %100 = vmatpush1.msra.mxu0 0.0
    %101 = vmatprep.subr.mxu0 0.0
    %102 = vmatpush1.msra.mxu0 0.0
    %103 = vmatprep.subr.mxu0 0.0
    %104 = vmatpush1.msra.mxu0 0.0
    %105 = vmatprep.subr.mxu0 0.0
    %106 = vmatpush1.msra.mxu0 0.0
    %107 = vmatprep.subr.mxu0 0.0
    %108 = vmatpush1.msra.mxu0 0.0
    %109 = vmatprep.subr.mxu0 0.0
    %110 = vmatpush1.msra.mxu0 0.0
    %111 = vmatprep.subr.mxu0 0.0
    %112 = vmatpush1.msra.mxu0 0.0
    %113 = vmatprep.subr.mxu0 0.0
    %114 = vmatpush1.msra.mxu0 0.0
    %115 = vmatprep.subr.mxu0 0.0
    %116 = vmatpush1.msra.mxu0 0.0
    %117 = vmatprep.subr.mxu0 0.0
    %118 = vmatpush1.msra.mxu0 0.0
    %119 = vmatprep.subr.mxu0 0.0
    %120 = vmatpush1.msra.mxu0 0.0
    %121 = vmatprep.subr.mxu0 0.0
    %122 = vmatpush1.msra.mxu0 0.0
    %123 = vmatprep.subr.mxu0 0.0
    %124 = vmatpush1.msra.mxu0 0.0
    %125 = vmatprep.subr.mxu0 0.0
    %126 = vmatpush1.msra.mxu0 0.0
    %127 = vmatprep.subr.mxu0 0.0
    %128 = vmatpush1.msra.mxu0 0.0
    %129 = vmatprep.subr.mxu0 0.0
    %130 = vmatpush1.msra.mxu0 0.0
    %131 = vmatprep.subr.mxu0 0.0
    %132 = vmatpush1.msra.mxu0 0.0
    %133 = vmatprep.subr.mxu0 0.0
    %134 = vmatpush1.msra.mxu0 0.0
    %135 = vmatprep.subr.mxu0 0.0
    %136 = vmatpush1.msra.mxu0 0.0
    %137 = vmatprep.mubr.f32.mxu0 0.0
    %138 = vmatmul.mubr.f32.gmra.mrb[0].mxu0 %v71
    %v139 = vpop.f32.mrb[0].mxu0
    %v140 = vadd.f32 %v67, %v139
    %v141 = vpop.f32.mrb[0].mxu0
    %142 = vdwg.mxu0
    %s143 = sld [smem:[#allocation2]]
    %vm144 = vcmp.lt.f32.partialorder %v140, 0.0
    %v145 = vstv %s143
    %v146 = vmul.f32 %v145, %v140
    %v147 = vsel %vm144, %v146, %v140
    %v148 = vld [vmem:[%s4] sm:$0xff]
    %v149 = vld [vmem:[%s4 + $0x8] sm:$0xff]
    %v150 = vld [vmem:[%s4 + $0x10] sm:$0xff]
    %v151 = vld [vmem:[%s4 + $0x18] sm:$0xff]
    %v152 = vld [vmem:[%s4 + $0x20] sm:$0xff]
    %v153 = vld [vmem:[%s4 + $0x28] sm:$0xff]
    %v154 = vld [vmem:[%s4 + $0x30] sm:$0xff]
    %v155 = vld [vmem:[%s4 + $0x38] sm:$0xff]
    %v156 = vld [vmem:[%s4 + $0x40] sm:$0xff]
    %v157 = vld [vmem:[%s4 + $0x48] sm:$0xff]
    %v158 = vld [vmem:[%s4 + $0x50] sm:$0xff]
    %v159 = vld [vmem:[%s4 + $0x58] sm:$0xff]
    %v160 = vld [vmem:[%s4 + $0x60] sm:$0xff]
    %v161 = vld [vmem:[%s4 + $0x68] sm:$0xff]
    %v162 = vld [vmem:[%s4 + $0x70] sm:$0xff]
    %v163 = vld [vmem:[%s4 + $0x78] sm:$0xff]
    %v164 = vld [vmem:[%s5] sm:$0x1]
    %v166 = vlaneseq
    %v167 = vshrl.u32 %v166, 7
    %v168 = vsub.s32 0, %v167
    %v169 = vrot.slane %v164, %v168
    %171 = vmatprep.subr.mxu0 0.0
    %172 = vmatpush1.msra.mxu0 %v148
    %173 = vmatprep.subr.mxu0 0.0
    %174 = vmatpush1.msra.mxu0 %v149
    %175 = vmatprep.subr.mxu0 0.0
    %176 = vmatpush1.msra.mxu0 %v150
    %177 = vmatprep.subr.mxu0 0.0
    %178 = vmatpush1.msra.mxu0 %v151
    %179 = vmatprep.subr.mxu0 0.0
    %180 = vmatpush1.msra.mxu0 %v152
    %181 = vmatprep.subr.mxu0 0.0
    %182 = vmatpush1.msra.mxu0 %v153
    %183 = vmatprep.subr.mxu0 0.0
    %184 = vmatpush1.msra.mxu0 %v154
    %185 = vmatprep.subr.mxu0 0.0
    %186 = vmatpush1.msra.mxu0 %v155
    %187 = vmatprep.subr.mxu0 0.0
    %188 = vmatpush1.msra.mxu0 %v156
    %189 = vmatprep.subr.mxu0 0.0
    %190 = vmatpush1.msra.mxu0 %v157
    %191 = vmatprep.subr.mxu0 0.0
    %192 = vmatpush1.msra.mxu0 %v158
    %193 = vmatprep.subr.mxu0 0.0
    %194 = vmatpush1.msra.mxu0 %v159
    %195 = vmatprep.subr.mxu0 0.0
    %196 = vmatpush1.msra.mxu0 %v160
    %197 = vmatprep.subr.mxu0 0.0
    %198 = vmatpush1.msra.mxu0 %v161
    %199 = vmatprep.subr.mxu0 0.0
    %200 = vmatpush1.msra.mxu0 %v162
    %201 = vmatprep.subr.mxu0 0.0
    %202 = vmatpush1.msra.mxu0 %v163
    %203 = vmatprep.subr.mxu0 0.0
    %204 = vmatpush1.msra.mxu0 0.0
    %205 = vmatprep.subr.mxu0 0.0
    %206 = vmatpush1.msra.mxu0 0.0
    %207 = vmatprep.subr.mxu0 0.0
    %208 = vmatpush1.msra.mxu0 0.0
    %209 = vmatprep.subr.mxu0 0.0
    %210 = vmatpush1.msra.mxu0 0.0
    %211 = vmatprep.subr.mxu0 0.0
    %212 = vmatpush1.msra.mxu0 0.0
    %213 = vmatprep.subr.mxu0 0.0
    %214 = vmatpush1.msra.mxu0 0.0
    %215 = vmatprep.subr.mxu0 0.0
    %216 = vmatpush1.msra.mxu0 0.0
    %217 = vmatprep.subr.mxu0 0.0
    %218 = vmatpush1.msra.mxu0 0.0
    %219 = vmatprep.subr.mxu0 0.0
    %220 = vmatpush1.msra.mxu0 0.0
    %221 = vmatprep.subr.mxu0 0.0
    %222 = vmatpush1.msra.mxu0 0.0
    %223 = vmatprep.subr.mxu0 0.0
    %224 = vmatpush1.msra.mxu0 0.0
    %225 = vmatprep.subr.mxu0 0.0
    %226 = vmatpush1.msra.mxu0 0.0
    %227 = vmatprep.subr.mxu0 0.0
    %228 = vmatpush1.msra.mxu0 0.0
    %229 = vmatprep.subr.mxu0 0.0
    %230 = vmatpush1.msra.mxu0 0.0
    %231 = vmatprep.subr.mxu0 0.0
    %232 = vmatpush1.msra.mxu0 0.0
    %233 = vmatprep.subr.mxu0 0.0
    %234 = vmatpush1.msra.mxu0 0.0
    %235 = vmatprep.mubr.f32.mxu0 0.0
    %236 = vmatmul.mubr.f32.gmra.mrb[0].mxu0 %v147
    %v237 = vpop.f32.mrb[0].mxu0
    %v238 = vadd.f32 %v169, %v237
    %v239 = vpop.f32.mrb[0].mxu0
    %240 = vdwg.mxu0
    %s241 = sld [smem:[#allocation2 + $0x1]]
    %vm242 = vcmp.lt.f32.partialorder %v238, 0.0
    %v243 = vstv %s241
    %v244 = vmul.f32 %v243, %v238
    %v245 = vsel %vm242, %v244, %v238
    %v246 = vld [vmem:[%s6] sm:$0xff]
    %v247 = vld [vmem:[%s6 + $0x8] sm:$0xff]
    %v248 = vld [vmem:[%s6 + $0x10] sm:$0xff]
    %v249 = vld [vmem:[%s6 + $0x18] sm:$0xff]
    %v250 = vld [vmem:[%s6 + $0x20] sm:$0xff]
    %v251 = vld [vmem:[%s6 + $0x28] sm:$0xff]
    %v252 = vld [vmem:[%s6 + $0x30] sm:$0xff]
    %v253 = vld [vmem:[%s6 + $0x38] sm:$0xff]
    %v254 = vld [vmem:[%s6 + $0x40] sm:$0xff]
    %v255 = vld [vmem:[%s6 + $0x48] sm:$0xff]
    %v256 = vld [vmem:[%s6 + $0x50] sm:$0xff]
    %v257 = vld [vmem:[%s6 + $0x58] sm:$0xff]
    %v258 = vld [vmem:[%s6 + $0x60] sm:$0xff]
    %v259 = vld [vmem:[%s6 + $0x68] sm:$0xff]
    %v260 = vld [vmem:[%s6 + $0x70] sm:$0xff]
    %v261 = vld [vmem:[%s6 + $0x78] sm:$0xff]
    %v262 = vld [vmem:[%s7] sm:$0x1]
    %v264 = vlaneseq
    %v265 = vshrl.u32 %v264, 7
    %v266 = vsub.s32 0, %v265
    %v267 = vrot.slane %v262, %v266
    %269 = vmatprep.subr.mxu0 0.0
    %270 = vmatpush1.msra.mxu0 %v246
    %271 = vmatprep.subr.mxu0 0.0
    %272 = vmatpush1.msra.mxu0 %v247
    %273 = vmatprep.subr.mxu0 0.0
    %274 = vmatpush1.msra.mxu0 %v248
    %275 = vmatprep.subr.mxu0 0.0
    %276 = vmatpush1.msra.mxu0 %v249
    %277 = vmatprep.subr.mxu0 0.0
    %278 = vmatpush1.msra.mxu0 %v250
    %279 = vmatprep.subr.mxu0 0.0
    %280 = vmatpush1.msra.mxu0 %v251
    %281 = vmatprep.subr.mxu0 0.0
    %282 = vmatpush1.msra.mxu0 %v252
    %283 = vmatprep.subr.mxu0 0.0
    %284 = vmatpush1.msra.mxu0 %v253
    %285 = vmatprep.subr.mxu0 0.0
    %286 = vmatpush1.msra.mxu0 %v254
    %287 = vmatprep.subr.mxu0 0.0
    %288 = vmatpush1.msra.mxu0 %v255
    %289 = vmatprep.subr.mxu0 0.0
    %290 = vmatpush1.msra.mxu0 %v256
    %291 = vmatprep.subr.mxu0 0.0
    %292 = vmatpush1.msra.mxu0 %v257
    %293 = vmatprep.subr.mxu0 0.0
    %294 = vmatpush1.msra.mxu0 %v258
    %295 = vmatprep.subr.mxu0 0.0
    %296 = vmatpush1.msra.mxu0 %v259
    %297 = vmatprep.subr.mxu0 0.0
    %298 = vmatpush1.msra.mxu0 %v260
    %299 = vmatprep.subr.mxu0 0.0
    %300 = vmatpush1.msra.mxu0 %v261
    %301 = vmatprep.subr.mxu0 0.0
    %302 = vmatpush1.msra.mxu0 0.0
    %303 = vmatprep.subr.mxu0 0.0
    %304 = vmatpush1.msra.mxu0 0.0
    %305 = vmatprep.subr.mxu0 0.0
    %306 = vmatpush1.msra.mxu0 0.0
    %307 = vmatprep.subr.mxu0 0.0
    %308 = vmatpush1.msra.mxu0 0.0
    %309 = vmatprep.subr.mxu0 0.0
    %310 = vmatpush1.msra.mxu0 0.0
    %311 = vmatprep.subr.mxu0 0.0
    %312 = vmatpush1.msra.mxu0 0.0
    %313 = vmatprep.subr.mxu0 0.0
    %314 = vmatpush1.msra.mxu0 0.0
    %315 = vmatprep.subr.mxu0 0.0
    %316 = vmatpush1.msra.mxu0 0.0
    %317 = vmatprep.subr.mxu0 0.0
    %318 = vmatpush1.msra.mxu0 0.0
    %319 = vmatprep.subr.mxu0 0.0
    %320 = vmatpush1.msra.mxu0 0.0
    %321 = vmatprep.subr.mxu0 0.0
    %322 = vmatpush1.msra.mxu0 0.0
    %323 = vmatprep.subr.mxu0 0.0
    %324 = vmatpush1.msra.mxu0 0.0
    %325 = vmatprep.subr.mxu0 0.0
    %326 = vmatpush1.msra.mxu0 0.0
    %327 = vmatprep.subr.mxu0 0.0
    %328 = vmatpush1.msra.mxu0 0.0
    %329 = vmatprep.subr.mxu0 0.0
    %330 = vmatpush1.msra.mxu0 0.0
    %331 = vmatprep.subr.mxu0 0.0
    %332 = vmatpush1.msra.mxu0 0.0
    %333 = vmatprep.mubr.f32.mxu0 0.0
    %334 = vmatmul.mubr.f32.gmra.mrb[0].mxu0 %v245
    %v335 = vpop.f32.mrb[0].mxu0
    %v336 = vadd.f32 %v267, %v335
    %v337 = vpop.f32.mrb[0].mxu0
    %338 = vdwg.mxu0
    %s339 = sld [smem:[#allocation2 + $0x2]]
    %vm340 = vcmp.lt.f32.partialorder %v336, 0.0
    %v341 = vstv %s339
    %v342 = vmul.f32 %v341, %v336
    %v343 = vsel %vm340, %v342, %v336
    %vm344 = vcmask 130048
    %345 = vst.msk [vmem:[#allocation7] sm:$0xff] %vm344, %v343
    // Predicated region
    $region42: #{tpu_custom_call.1} parent=1 // pred_check
      _
    $region43: #{tpu_custom_call.1} parent=1 // pred_check_branch
      %347 = sbr.rel (0) target = $region45
    $region44: #{tpu_custom_call.1} parent=1 // pred_region
      %s349 = ssub.s32 128, 128
      %350 = vsyncadd [#allocation4], %s349
      %s352 = sshll.u32 [#allocation7], 4
      %s353 = int_to_ptr.vmem [resolvable:$true] %s352
      %355 = dma.vmem_to_hbm [thread:$0]  %s353, 128, %s8, [#allocation4]
    $region45: #{tpu_custom_call.1} parent=1 // pred_fallthru
      _
    // Predicated region
    $region46: #{tpu_custom_call.1} parent=1 // pred_check
      _
    $region47: #{tpu_custom_call.1} parent=1 // pred_check_branch
      %357 = sbr.rel (0) target = $region49
    $region48: #{tpu_custom_call.1} parent=1 // pred_region
      %358 = dma.done [#allocation4], 128
    $region49: #{tpu_custom_call.1} parent=1 // pred_fallthru
      _
    %359 = vsyncpa [#allocation3], 1
    %360 = vsyncpa [#allocation4], 1
    %361 = vsyncpa [#allocation5], 1

// kernel: tpu_custom_call.1
$region0: #{tpu_custom_call.1}
  #allocation0 [shape = 'u32[]', space=smem, size = 0x4, offset = 0x4, fixed_abs, tag = 'smem constant byte address 0x4 - core index']
  #allocation1 [shape = 'u32[144,128]{1,0:T(1,128)}', space=vmem, size = 0x12000, scoped, tag = 'internal scratch']
  %s0 = inlined_call_operand.vmem [shape: f32[3], index: 0, kind: input, shape index: {}]
  %s1 = inlined_call_operand.vmem [shape: f32[8,32], index: 1, kind: input, shape index: {}]
  %s2 = inlined_call_operand.hbm [shape: f32[32,128], index: 2, kind: input, shape index: {}]
  %s3 = inlined_call_operand.vmem [shape: f32[1,128], index: 3, kind: input, shape index: {}]
  %s4 = inlined_call_operand.vmem [shape: f32[128,128], index: 4, kind: input, shape index: {}]
  %s5 = inlined_call_operand.vmem [shape: f32[1,128], index: 5, kind: input, shape index: {}]
  %s6 = inlined_call_operand.vmem [shape: f32[128,16], index: 6, kind: input, shape index: {}]
  %s7 = inlined_call_operand.vmem [shape: f32[1,16], index: 7, kind: input, shape index: {}]
  %s8 = inlined_call_operand.hbm [shape: f32[8,16], index: 8, kind: output, shape index: {}]
  %s9 = sld [smem:[#allocation0]]
  $region50: #{tpu_custom_call.1} parent=0
    _
  %s11 = ssub.s32 1, %s9
  %s12 = scalar_select 0, %s11, %s9
  $region1: #{tpu_custom_call.1} parent=0
    #allocation2 [shape = 'u8[512]{0}', space=smem, size = 0x200, scoped, tag = 'input window, operand 0, single buffered']
    #allocation3 [shape = 's32[1]{0}', space=sflag, size = 0x4, scoped, tag = 'scoped memory for tpu_custom_call.1']
    #allocation4 [shape = 's32[1]{0}', space=sflag, size = 0x4, scoped, tag = 'scoped memory for tpu_custom_call.1']
    #allocation5 [shape = 's32[1]{0}', space=sflag, size = 0x4, scoped, tag = 'scoped memory for tpu_custom_call.1']
    #allocation6 [shape = 'u8[16384]{0}', space=vmem, size = 0x4000, scoped, tag = 'input window, operand 2, single buffered']
    #allocation7 [shape = 'u8[4096]{0}', space=vmem, size = 0x1000, scoped, tag = 'output window, operand 0, single buffered']
    %13 = vsyncpa [#allocation5], 0
    %14 = vsyncpa [#allocation3], 0
    %15 = vsyncpa [#allocation4], 0
    // Predicated region
    $region2: #{tpu_custom_call.1} parent=1 // pred_check
      _
    $region3: #{tpu_custom_call.1} parent=1 // pred_check_branch
      %17 = sbr.rel (0) target = $region5
    $region4: #{tpu_custom_call.1} parent=1 // pred_region
      %s19 = ssub.s32 16, 16
      %20 = vsyncadd [#allocation5], %s19
      %s22 = sshll.u32 %s0, 4
      %s23 = int_to_ptr.vmem [resolvable:$true] %s22
      %25 = dma.vmem_to_smem %s23, 16, [#allocation2], [#allocation5]
    $region5: #{tpu_custom_call.1} parent=1 // pred_fallthru
      _
    // Predicated region
    $region6: #{tpu_custom_call.1} parent=1 // pred_check
      _
    $region7: #{tpu_custom_call.1} parent=1 // pred_check_branch
      %27 = sbr.rel (0) target = $region9
    $region8: #{tpu_custom_call.1} parent=1 // pred_region
      _
    $region9: #{tpu_custom_call.1} parent=1 // pred_fallthru
      _
    // Predicated region
    $region10: #{tpu_custom_call.1} parent=1 // pred_check
      _
    $region11: #{tpu_custom_call.1} parent=1 // pred_check_branch
      %29 = sbr.rel (0) target = $region13
    $region12: #{tpu_custom_call.1} parent=1 // pred_region
      %s31 = ssub.s32 512, 512
      %32 = vsyncadd [#allocation3], %s31
      %s33 = sshll.u32 [#allocation6], 4
      %s34 = int_to_ptr.vmem [resolvable:$true] %s33
      %39 = dma.hbm_to_vmem [thread:$0]  %s2, 512, %s34, [#allocation3], 128, 128, 8
    $region13: #{tpu_custom_call.1} parent=1 // pred_fallthru
      _
    // Predicated region
    $region14: #{tpu_custom_call.1} parent=1 // pred_check
      _
    $region15: #{tpu_custom_call.1} parent=1 // pred_check_branch
      %41 = sbr.rel (0) target = $region17
    $region16: #{tpu_custom_call.1} parent=1 // pred_region
      _
    $region17: #{tpu_custom_call.1} parent=1 // pred_fallthru
      _
    // Predicated region
    $region18: #{tpu_custom_call.1} parent=1 // pred_check
      _
    $region19: #{tpu_custom_call.1} parent=1 // pred_check_branch
      %43 = sbr.rel (0) target = $region21
    $region20: #{tpu_custom_call.1} parent=1 // pred_region
      _
    $region21: #{tpu_custom_call.1} parent=1 // pred_fallthru
      _
    // Predicated region
    $region22: #{tpu_custom_call.1} parent=1 // pred_check
      _
    $region23: #{tpu_custom_call.1} parent=1 // pred_check_branch
      %45 = sbr.rel (0) target = $region25
    $region24: #{tpu_custom_call.1} parent=1 // pred_region
      _
    $region25: #{tpu_custom_call.1} parent=1 // pred_fallthru
      _
    // Predicated region
    $region26: #{tpu_custom_call.1} parent=1 // pred_check
      _
    $region27: #{tpu_custom_call.1} parent=1 // pred_check_branch
      %47 = sbr.rel (0) target = $region29
    $region28: #{tpu_custom_call.1} parent=1 // pred_region
      _
    $region29: #{tpu_custom_call.1} parent=1 // pred_fallthru
      _
    // Predicated region
    $region30: #{tpu_custom_call.1} parent=1 // pred_check
      _
    $region31: #{tpu_custom_call.1} parent=1 // pred_check_branch
      %49 = sbr.rel (0) target = $region33
    $region32: #{tpu_custom_call.1} parent=1 // pred_region
      _
    $region33: #{tpu_custom_call.1} parent=1 // pred_fallthru
      _
    // Predicated region
    $region34: #{tpu_custom_call.1} parent=1 // pred_check
      _
    $region35: #{tpu_custom_call.1} parent=1 // pred_check_branch
      %51 = sbr.rel (0) target = $region37
    $region36: #{tpu_custom_call.1} parent=1 // pred_region
      %52 = dma.done [#allocation5], 16
    $region37: #{tpu_custom_call.1} parent=1 // pred_fallthru
      _
    // Predicated region
    $region38: #{tpu_custom_call.1} parent=1 // pred_check
      _
    $region39: #{tpu_custom_call.1} parent=1 // pred_check_branch
      %54 = sbr.rel (0) target = $region41
    $region40: #{tpu_custom_call.1} parent=1 // pred_region
      %55 = dma.done [#allocation3], 512
    $region41: #{tpu_custom_call.1} parent=1 // pred_fallthru
      _
    %56 = sfence
    %v57 = vld [vmem:[%s1] sm:$0xff]
    %v58 = vld [vmem:[#allocation6] sm:$0xff]
    %v59 = vld [vmem:[#allocation6 + $0x8] sm:$0xff]
    %v60 = vld [vmem:[#allocation6 + $0x10] sm:$0xff]
    %v61 = vld [vmem:[#allocation6 + $0x18] sm:$0xff]
    %v62 = vld [vmem:[%s3] sm:$0x1]
    %v64 = vlaneseq
    %v65 = vshrl.u32 %v64, 7
    %v66 = vsub.s32 0, %v65
    %v67 = vrot.slane %v62, %v66
    %vm69 = vcmask 261120
    %v71 = vsel %vm69, %v57, 0
    %73 = vmatprep.subr.mxu0 0.0
    %74 = vmatpush1.msra.mxu0 %v58
    %75 = vmatprep.subr.mxu0 0.0
    %76 = vmatpush1.msra.mxu0 %v59
    %77 = vmatprep.subr.mxu0 0.0
    %78 = vmatpush1.msra.mxu0 %v60
    %79 = vmatprep.subr.mxu0 0.0
    %80 = vmatpush1.msra.mxu0 %v61
    %81 = vmatprep.subr.mxu0 0.0
    %82 = vmatpush1.msra.mxu0 0.0
    %83 = vmatprep.subr.mxu0 0.0
    %84 = vmatpush1.msra.mxu0 0.0
    %85 = vmatprep.subr.mxu0 0.0
    %86 = vmatpush1.msra.mxu0 0.0
    %87 = vmatprep.subr.mxu0 0.0
    %88 = vmatpush1.msra.mxu0 0.0
    %89 = vmatprep.subr.mxu0 0.0
    %90 = vmatpush1.msra.mxu0 0.0
    %91 = vmatprep.subr.mxu0 0.0
    %92 = vmatpush1.msra.mxu0 0.0
    %93 = vmatprep.subr.mxu0 0.0
    %94 = vmatpush1.msra.mxu0 0.0
    %95 = vmatprep.subr.mxu0 0.0
    %96 = vmatpush1.msra.mxu0 0.0
    %97 = vmatprep.subr.mxu0 0.0
    %98 = vmatpush1.msra.mxu0 0.0
    %99 = vmatprep.subr.mxu0 0.0
    %100 = vmatpush1.msra.mxu0 0.0
    %101 = vmatprep.subr.mxu0 0.0
    %102 = vmatpush1.msra.mxu0 0.0
    %103 = vmatprep.subr.mxu0 0.0
    %104 = vmatpush1.msra.mxu0 0.0
    %105 = vmatprep.subr.mxu0 0.0
    %106 = vmatpush1.msra.mxu0 0.0
    %107 = vmatprep.subr.mxu0 0.0
    %108 = vmatpush1.msra.mxu0 0.0
    %109 = vmatprep.subr.mxu0 0.0
    %110 = vmatpush1.msra.mxu0 0.0
    %111 = vmatprep.subr.mxu0 0.0
    %112 = vmatpush1.msra.mxu0 0.0
    %113 = vmatprep.subr.mxu0 0.0
    %114 = vmatpush1.msra.mxu0 0.0
    %115 = vmatprep.subr.mxu0 0.0
    %116 = vmatpush1.msra.mxu0 0.0
    %117 = vmatprep.subr.mxu0 0.0
    %118 = vmatpush1.msra.mxu0 0.0
    %119 = vmatprep.subr.mxu0 0.0
    %120 = vmatpush1.msra.mxu0 0.0
    %121 = vmatprep.subr.mxu0 0.0
    %122 = vmatpush1.msra.mxu0 0.0
    %123 = vmatprep.subr.mxu0 0.0
    %124 = vmatpush1.msra.mxu0 0.0
    %125 = vmatprep.subr.mxu0 0.0
    %126 = vmatpush1.msra.mxu0 0.0
    %127 = vmatprep.subr.mxu0 0.0
    %128 = vmatpush1.msra.mxu0 0.0
    %129 = vmatprep.subr.mxu0 0.0
    %130 = vmatpush1.msra.mxu0 0.0
    %131 = vmatprep.subr.mxu0 0.0
    %132 = vmatpush1.msra.mxu0 0.0
    %133 = vmatprep.subr.mxu0 0.0
    %134 = vmatpush1.msra.mxu0 0.0
    %135 = vmatprep.subr.mxu0 0.0
    %136 = vmatpush1.msra.mxu0 0.0
    %137 = vmatprep.mubr.f32.mxu0 0.0
    %138 = vmatmul.mubr.f32.gmra.mrb[0].mxu0 %v71
    %v139 = vpop.f32.mrb[0].mxu0
    %v140 = vadd.f32 %v67, %v139
    %v141 = vpop.f32.mrb[0].mxu0
    %142 = vdwg.mxu0
    %s143 = sld [smem:[#allocation2]]
    %vm144 = vcmp.lt.f32.partialorder %v140, 0.0
    %v145 = vstv %s143
    %v146 = vmul.f32 %v145, %v140
    %v147 = vsel %vm144, %v146, %v140
    %v148 = vld [vmem:[%s4] sm:$0xff]
    %v149 = vld [vmem:[%s4 + $0x8] sm:$0xff]
    %v150 = vld [vmem:[%s4 + $0x10] sm:$0xff]
    %v151 = vld [vmem:[%s4 + $0x18] sm:$0xff]
    %v152 = vld [vmem:[%s4 + $0x20] sm:$0xff]
    %v153 = vld [vmem:[%s4 + $0x28] sm:$0xff]
    %v154 = vld [vmem:[%s4 + $0x30] sm:$0xff]
    %v155 = vld [vmem:[%s4 + $0x38] sm:$0xff]
    %v156 = vld [vmem:[%s4 + $0x40] sm:$0xff]
    %v157 = vld [vmem:[%s4 + $0x48] sm:$0xff]
    %v158 = vld [vmem:[%s4 + $0x50] sm:$0xff]
    %v159 = vld [vmem:[%s4 + $0x58] sm:$0xff]
    %v160 = vld [vmem:[%s4 + $0x60] sm:$0xff]
    %v161 = vld [vmem:[%s4 + $0x68] sm:$0xff]
    %v162 = vld [vmem:[%s4 + $0x70] sm:$0xff]
    %v163 = vld [vmem:[%s4 + $0x78] sm:$0xff]
    %v164 = vld [vmem:[%s5] sm:$0x1]
    %v166 = vlaneseq
    %v167 = vshrl.u32 %v166, 7
    %v168 = vsub.s32 0, %v167
    %v169 = vrot.slane %v164, %v168
    %171 = vmatprep.subr.mxu0 0.0
    %172 = vmatpush1.msra.mxu0 %v148
    %173 = vmatprep.subr.mxu0 0.0
    %174 = vmatpush1.msra.mxu0 %v149
    %175 = vmatprep.subr.mxu0 0.0
    %176 = vmatpush1.msra.mxu0 %v150
    %177 = vmatprep.subr.mxu0 0.0
    %178 = vmatpush1.msra.mxu0 %v151
    %179 = vmatprep.subr.mxu0 0.0
    %180 = vmatpush1.msra.mxu0 %v152
    %181 = vmatprep.subr.mxu0 0.0
    %182 = vmatpush1.msra.mxu0 %v153
    %183 = vmatprep.subr.mxu0 0.0
    %184 = vmatpush1.msra.mxu0 %v154
    %185 = vmatprep.subr.mxu0 0.0
    %186 = vmatpush1.msra.mxu0 %v155
    %187 = vmatprep.subr.mxu0 0.0
    %188 = vmatpush1.msra.mxu0 %v156
    %189 = vmatprep.subr.mxu0 0.0
    %190 = vmatpush1.msra.mxu0 %v157
    %191 = vmatprep.subr.mxu0 0.0
    %192 = vmatpush1.msra.mxu0 %v158
    %193 = vmatprep.subr.mxu0 0.0
    %194 = vmatpush1.msra.mxu0 %v159
    %195 = vmatprep.subr.mxu0 0.0
    %196 = vmatpush1.msra.mxu0 %v160
    %197 = vmatprep.subr.mxu0 0.0
    %198 = vmatpush1.msra.mxu0 %v161
    %199 = vmatprep.subr.mxu0 0.0
    %200 = vmatpush1.msra.mxu0 %v162
    %201 = vmatprep.subr.mxu0 0.0
    %202 = vmatpush1.msra.mxu0 %v163
    %203 = vmatprep.subr.mxu0 0.0
    %204 = vmatpush1.msra.mxu0 0.0
    %205 = vmatprep.subr.mxu0 0.0
    %206 = vmatpush1.msra.mxu0 0.0
    %207 = vmatprep.subr.mxu0 0.0
    %208 = vmatpush1.msra.mxu0 0.0
    %209 = vmatprep.subr.mxu0 0.0
    %210 = vmatpush1.msra.mxu0 0.0
    %211 = vmatprep.subr.mxu0 0.0
    %212 = vmatpush1.msra.mxu0 0.0
    %213 = vmatprep.subr.mxu0 0.0
    %214 = vmatpush1.msra.mxu0 0.0
    %215 = vmatprep.subr.mxu0 0.0
    %216 = vmatpush1.msra.mxu0 0.0
    %217 = vmatprep.subr.mxu0 0.0
    %218 = vmatpush1.msra.mxu0 0.0
    %219 = vmatprep.subr.mxu0 0.0
    %220 = vmatpush1.msra.mxu0 0.0
    %221 = vmatprep.subr.mxu0 0.0
    %222 = vmatpush1.msra.mxu0 0.0
    %223 = vmatprep.subr.mxu0 0.0
    %224 = vmatpush1.msra.mxu0 0.0
    %225 = vmatprep.subr.mxu0 0.0
    %226 = vmatpush1.msra.mxu0 0.0
    %227 = vmatprep.subr.mxu0 0.0
    %228 = vmatpush1.msra.mxu0 0.0
    %229 = vmatprep.subr.mxu0 0.0
    %230 = vmatpush1.msra.mxu0 0.0
    %231 = vmatprep.subr.mxu0 0.0
    %232 = vmatpush1.msra.mxu0 0.0
    %233 = vmatprep.subr.mxu0 0.0
    %234 = vmatpush1.msra.mxu0 0.0
    %235 = vmatprep.mubr.f32.mxu0 0.0
    %236 = vmatmul.mubr.f32.gmra.mrb[0].mxu0 %v147
    %v237 = vpop.f32.mrb[0].mxu0
    %v238 = vadd.f32 %v169, %v237
    %v239 = vpop.f32.mrb[0].mxu0
    %240 = vdwg.mxu0
    %s241 = sld [smem:[#allocation2 + $0x1]]
    %vm242 = vcmp.lt.f32.partialorder %v238, 0.0
    %v243 = vstv %s241
    %v244 = vmul.f32 %v243, %v238
    %v245 = vsel %vm242, %v244, %v238
    %v246 = vld [vmem:[%s6] sm:$0xff]
    %v247 = vld [vmem:[%s6 + $0x8] sm:$0xff]
    %v248 = vld [vmem:[%s6 + $0x10] sm:$0xff]
    %v249 = vld [vmem:[%s6 + $0x18] sm:$0xff]
    %v250 = vld [vmem:[%s6 + $0x20] sm:$0xff]
    %v251 = vld [vmem:[%s6 + $0x28] sm:$0xff]
    %v252 = vld [vmem:[%s6 + $0x30] sm:$0xff]
    %v253 = vld [vmem:[%s6 + $0x38] sm:$0xff]
    %v254 = vld [vmem:[%s6 + $0x40] sm:$0xff]
    %v255 = vld [vmem:[%s6 + $0x48] sm:$0xff]
    %v256 = vld [vmem:[%s6 + $0x50] sm:$0xff]
    %v257 = vld [vmem:[%s6 + $0x58] sm:$0xff]
    %v258 = vld [vmem:[%s6 + $0x60] sm:$0xff]
    %v259 = vld [vmem:[%s6 + $0x68] sm:$0xff]
    %v260 = vld [vmem:[%s6 + $0x70] sm:$0xff]
    %v261 = vld [vmem:[%s6 + $0x78] sm:$0xff]
    %v262 = vld [vmem:[%s7] sm:$0x1]
    %v264 = vlaneseq
    %v265 = vshrl.u32 %v264, 7
    %v266 = vsub.s32 0, %v265
    %v267 = vrot.slane %v262, %v266
    %269 = vmatprep.subr.mxu0 0.0
    %270 = vmatpush1.msra.mxu0 %v246
    %271 = vmatprep.subr.mxu0 0.0
    %272 = vmatpush1.msra.mxu0 %v247
    %273 = vmatprep.subr.mxu0 0.0
    %274 = vmatpush1.msra.mxu0 %v248
    %275 = vmatprep.subr.mxu0 0.0
    %276 = vmatpush1.msra.mxu0 %v249
    %277 = vmatprep.subr.mxu0 0.0
    %278 = vmatpush1.msra.mxu0 %v250
    %279 = vmatprep.subr.mxu0 0.0
    %280 = vmatpush1.msra.mxu0 %v251
    %281 = vmatprep.subr.mxu0 0.0
    %282 = vmatpush1.msra.mxu0 %v252
    %283 = vmatprep.subr.mxu0 0.0
    %284 = vmatpush1.msra.mxu0 %v253
    %285 = vmatprep.subr.mxu0 0.0
    %286 = vmatpush1.msra.mxu0 %v254
    %287 = vmatprep.subr.mxu0 0.0
    %288 = vmatpush1.msra.mxu0 %v255
    %289 = vmatprep.subr.mxu0 0.0
    %290 = vmatpush1.msra.mxu0 %v256
    %291 = vmatprep.subr.mxu0 0.0
    %292 = vmatpush1.msra.mxu0 %v257
    %293 = vmatprep.subr.mxu0 0.0
    %294 = vmatpush1.msra.mxu0 %v258
    %295 = vmatprep.subr.mxu0 0.0
    %296 = vmatpush1.msra.mxu0 %v259
    %297 = vmatprep.subr.mxu0 0.0
    %298 = vmatpush1.msra.mxu0 %v260
    %299 = vmatprep.subr.mxu0 0.0
    %300 = vmatpush1.msra.mxu0 %v261
    %301 = vmatprep.subr.mxu0 0.0
    %302 = vmatpush1.msra.mxu0 0.0
    %303 = vmatprep.subr.mxu0 0.0
    %304 = vmatpush1.msra.mxu0 0.0
    %305 = vmatprep.subr.mxu0 0.0
    %306 = vmatpush1.msra.mxu0 0.0
    %307 = vmatprep.subr.mxu0 0.0
    %308 = vmatpush1.msra.mxu0 0.0
    %309 = vmatprep.subr.mxu0 0.0
    %310 = vmatpush1.msra.mxu0 0.0
    %311 = vmatprep.subr.mxu0 0.0
    %312 = vmatpush1.msra.mxu0 0.0
    %313 = vmatprep.subr.mxu0 0.0
    %314 = vmatpush1.msra.mxu0 0.0
    %315 = vmatprep.subr.mxu0 0.0
    %316 = vmatpush1.msra.mxu0 0.0
    %317 = vmatprep.subr.mxu0 0.0
    %318 = vmatpush1.msra.mxu0 0.0
    %319 = vmatprep.subr.mxu0 0.0
    %320 = vmatpush1.msra.mxu0 0.0
    %321 = vmatprep.subr.mxu0 0.0
    %322 = vmatpush1.msra.mxu0 0.0
    %323 = vmatprep.subr.mxu0 0.0
    %324 = vmatpush1.msra.mxu0 0.0
    %325 = vmatprep.subr.mxu0 0.0
    %326 = vmatpush1.msra.mxu0 0.0
    %327 = vmatprep.subr.mxu0 0.0
    %328 = vmatpush1.msra.mxu0 0.0
    %329 = vmatprep.subr.mxu0 0.0
    %330 = vmatpush1.msra.mxu0 0.0
    %331 = vmatprep.subr.mxu0 0.0
    %332 = vmatpush1.msra.mxu0 0.0
    %333 = vmatprep.mubr.f32.mxu0 0.0
    %334 = vmatmul.mubr.f32.gmra.mrb[0].mxu0 %v245
    %v335 = vpop.f32.mrb[0].mxu0
    %v336 = vadd.f32 %v267, %v335
    %v337 = vpop.f32.mrb[0].mxu0
    %338 = vdwg.mxu0
    %s339 = sld [smem:[#allocation2 + $0x2]]
    %vm340 = vcmp.lt.f32.partialorder %v336, 0.0
    %v341 = vstv %s339
    %v342 = vmul.f32 %v341, %v336
    %v343 = vsel %vm340, %v342, %v336
    %vm344 = vcmask 130048
    %345 = vst.msk [vmem:[#allocation7] sm:$0xff] %vm344, %v343
    // Predicated region
    $region42: #{tpu_custom_call.1} parent=1 // pred_check
      _
    $region43: #{tpu_custom_call.1} parent=1 // pred_check_branch
      %347 = sbr.rel (0) target = $region45
    $region44: #{tpu_custom_call.1} parent=1 // pred_region
      %s349 = ssub.s32 128, 128
      %350 = vsyncadd [#allocation4], %s349
      %s352 = sshll.u32 [#allocation7], 4
      %s353 = int_to_ptr.vmem [resolvable:$true] %s352
      %355 = dma.vmem_to_hbm [thread:$0]  %s353, 128, %s8, [#allocation4]
    $region45: #{tpu_custom_call.1} parent=1 // pred_fallthru
      _
    // Predicated region
    $region46: #{tpu_custom_call.1} parent=1 // pred_check
      _
    $region47: #{tpu_custom_call.1} parent=1 // pred_check_branch
      %357 = sbr.rel (0) target = $region49
    $region48: #{tpu_custom_call.1} parent=1 // pred_region
      %358 = dma.done [#allocation4], 128
    $region49: #{tpu_custom_call.1} parent=1 // pred_fallthru
      _
    %359 = vsyncpa [#allocation3], 1
    %360 = vsyncpa [#allocation4], 1
    %361 = vsyncpa [#allocation5], 1

</llo_original>
